<compile_context>
chip_gen: v7x
topology: tpu7x:2x2x1
jax: 0.10.0
libtpu: 0.0.40
codegen_flags: <defaults>
</compile_context>

<pallas_src>
import jax
import jax.numpy as jnp
from jax.experimental import pallas as pl
from jax.experimental.pallas import tpu as pltpu

INPUT_DIM = 2
OUTPUT_DIM = 1
LANE = 128


def _round_up(n, m):
    return ((n + m - 1) // m) * m


def _choose_tile(batch, tb_target):
    """Lane-aligned batch tile; keeps padding waste <1 tile and grid >= 2 when big."""
    tb_target = max(LANE, _round_up(int(tb_target), LANE))
    if batch <= tb_target:
        # One tile covering everything; at most 127 dead lanes.
        return _round_up(max(batch, 1), LANE)
    # Large batch: cap the tile so there are at least 2 grid steps (v7x megacore).
    half = _round_up(pl.cdiv(batch, 2), LANE)
    return min(tb_target, half)


def make_mlp_kernel(num_layers: int, *, fold_last: bool,
                    hidden_dtype=jnp.float32, small_k_threshold: int = 4):
    """Fused feature-major MLP: (Linear + ReLU) * (n-1) + final Linear."""

    def kernel(x_ref, *refs):
        o_ref = refs[-1]
        param_refs = refs[:-1]   # w0, b0, w1, b1, ...  (biases are (out, 1))

        h = x_ref[...]           # (in_dim, TB): features on sublanes, batch on lanes
        if h.dtype != jnp.float32:
            h = h.astype(jnp.float32)

        for i in range(num_layers):
            w_ref = param_refs[2 * i]
            b_ref = param_refs[2 * i + 1]
            is_last = (i == num_layers - 1)

            if is_last and fold_last:
                # Final Linear(k -> 1): w_ref is (k, 1).  VPU multiply + XLU
                # sublane reduction; avoids an MXU pass with M padded 1 -> 128.
                w = w_ref[...]                                   # (k, 1)
                b = b_ref[...]                                   # (1, 1)
                h = jnp.sum(w * h, axis=0, keepdims=True) + b    # (1, TB)
            else:
                w = w_ref[...]                                   # (out, k)
                b = b_ref[...]                                   # (out, 1)
                k_dim = w.shape[1]
                if k_dim <= small_k_threshold:
                    # Tiny contraction (K=2 input layer): VPU broadcast FMAs
                    # instead of a >98%-K-padded MXU pass.
                    acc = b
                    for k in range(k_dim):
                        acc = acc + w[:, k:k + 1] * h[k:k + 1, :]
                    h = acc
                else:
                    # MXU matmul with f32 accumulation, lane-dense bias add.
                    h = jnp.dot(w.astype(hidden_dtype), h.astype(hidden_dtype),
                                preferred_element_type=jnp.float32) + b

            if not is_last:
                h = jnp.maximum(h, 0.0)      # ReLU on VPU, all 128 lanes busy

        o_ref[...] = h.astype(o_ref.dtype)

    return kernel


def mlp_forward(x, params, *, tb=8192, hidden_dtype=jnp.float32):
    """x: (batch, INPUT_DIM) f32; params: list of (W, b), W in PyTorch (out, in) layout."""
    batch, in_dim = x.shape
    out_dim = params[-1][0].shape[0]
    num_layers = len(params)
    fold_last = (out_dim == 1)

    tb_eff = _choose_tile(batch, tb)
    assert tb_eff % LANE == 0, tb_eff
    grid = (pl.cdiv(batch, tb_eff),)         # ragged last block handled by Pallas

    # Single feature-major transpose (no tile padding, no zeros+set materialization).
    x_fm = x.T                               # (in_dim, batch)

    flat_params = []
    for li, (w, b) in enumerate(params):
        if fold_last and li == num_layers - 1:
            flat_params.append(w.T)          # (k, 1) for the folded output layer
        else:
            flat_params.append(w)            # (out, k), used directly: h = W @ h + b
        flat_params.append(b.reshape(-1, 1)) # (out, 1) broadcasts over lanes
    param_specs = [pl.BlockSpec(p.shape, lambda i: (0, 0)) for p in flat_params]

    out_fm = pl.pallas_call(
        make_mlp_kernel(num_layers, fold_last=fold_last, hidden_dtype=hidden_dtype),
        out_shape=jax.ShapeDtypeStruct((out_dim, batch), jnp.float32),
        grid=grid,
        in_specs=[pl.BlockSpec((in_dim, tb_eff), lambda i: (0, i))] + param_specs,
        out_specs=pl.BlockSpec((out_dim, tb_eff), lambda i: (0, i)),
        compiler_params=pltpu.CompilerParams(
            dimension_semantics=("parallel",),          # megacore sharding on v7x
            vmem_limit_bytes=32 * 1024 * 1024),         # headroom for v5e / big tiles
    )(x_fm, *flat_params)

    if out_dim == 1:
        return out_fm.reshape(batch, 1)       # (1, batch) -> (batch, 1): free reshape
    return out_fm.T


def init_params(key, layer_dims):
    """PyTorch-style init: U(-1/sqrt(fan_in), 1/sqrt(fan_in)); W kept as (out, in)."""
    params = []
    for (fan_in, fan_out) in zip(layer_dims[:-1], layer_dims[1:]):
        key, kw, kb = jax.random.split(key, 3)
        bound = 1.0 / jnp.sqrt(jnp.float32(fan_in))
        w = jax.random.uniform(kw, (fan_out, fan_in), jnp.float32, -bound, bound)
        b = jax.random.uniform(kb, (fan_out,), jnp.float32, -bound, bound)
        params.append((w, b))
    return params


def reference_forward(x, params):
    """Pure-JAX reference of the PyTorch Sequential forward (x @ W.T + b)."""
    h = x
    for i, (w, b) in enumerate(params):
        h = jnp.dot(h, w.T, precision=jax.lax.Precision.HIGHEST) + b
        if i < len(params) - 1:
            h = jnp.maximum(h, 0.0)
    return h


if __name__ == "__main__":
    # Synthetic "network" config: node_value = 8, two layers with 4 nodes each
    # -> hidden dims [32, 32], matching the module's construction logic.
    node_value = 8
    nodes = [4, 4]
    hidden_dims = [node_value * n for n in nodes]
    layer_dims = [INPUT_DIM] + hidden_dims + [OUTPUT_DIM]   # [2, 32, 32, 1]

    key = jax.random.PRNGKey(0)
    key, kx = jax.random.split(key)
    batch = 8
    x = jax.random.normal(kx, (batch, INPUT_DIM), jnp.float32)
    params = init_params(key, layer_dims)

    out = jax.block_until_ready(mlp_forward(x, params))
    ref = reference_forward(x, params)
    assert out.shape == (batch, OUTPUT_DIM), out.shape
    assert jnp.allclose(out, ref, atol=1e-4, rtol=1e-4), (out, ref)

    # Multi-step ragged grid (batch not a multiple of the tile, 3 grid steps).
    key, kx2 = jax.random.split(key)
    batch2 = 1037
    x2 = jax.random.normal(kx2, (batch2, INPUT_DIM), jnp.float32)
    out2 = jax.block_until_ready(mlp_forward(x2, params, tb=512))
    ref2 = reference_forward(x2, params)
    assert out2.shape == (batch2, OUTPUT_DIM), out2.shape
    assert jnp.allclose(out2, ref2, atol=1e-4, rtol=1e-4)

    # Default (large-tile) path, exactly divisible batch.
    key, kx3 = jax.random.split(key)
    batch3 = 4096
    x3 = jax.random.normal(kx3, (batch3, INPUT_DIM), jnp.float32)
    out3 = jax.block_until_ready(mlp_forward(x3, params))
    ref3 = reference_forward(x3, params)
    assert out3.shape == (batch3, OUTPUT_DIM), out3.shape
    assert jnp.allclose(out3, ref3, atol=1e-4, rtol=1e-4)

    print("KERNEL_OK")
</pallas_src>

<mosaic_0001>
module attributes {stable_mosaic.version = 11 : i64} {
  func.func @kernel(%arg0: i32, %arg1: memref<2x128xf32, #tpu.memory_space<vmem>>, %arg2: memref<32x2xf32, #tpu.memory_space<vmem>>, %arg3: memref<32x1xf32, #tpu.memory_space<vmem>>, %arg4: memref<32x32xf32, #tpu.memory_space<vmem>>, %arg5: memref<32x1xf32, #tpu.memory_space<vmem>>, %arg6: memref<32x1xf32, #tpu.memory_space<vmem>>, %arg7: memref<1x1xf32, #tpu.memory_space<vmem>>, %arg8: memref<1x128xf32, #tpu.memory_space<vmem>>) attributes {dimension_semantics = [#tpu.dimension_semantics<parallel>], iteration_bounds = array<i64: 1>, scalar_prefetch = 0 : i64, scratch_operands = 0 : i64, tpu.core_type = #tpu.core_type<tc>, window_params = [{transform_indices = @transform_0, window_bounds = array<i64: 2, 128>}, {pipeline_mode = #tpu.pipeline_mode<synchronous>, transform_indices = @transform_1, window_bounds = array<i64: 32, 2>}, {pipeline_mode = #tpu.pipeline_mode<synchronous>, transform_indices = @transform_2, window_bounds = array<i64: 32, 1>}, {pipeline_mode = #tpu.pipeline_mode<synchronous>, transform_indices = @transform_3, window_bounds = array<i64: 32, 32>}, {pipeline_mode = #tpu.pipeline_mode<synchronous>, transform_indices = @transform_4, window_bounds = array<i64: 32, 1>}, {pipeline_mode = #tpu.pipeline_mode<synchronous>, transform_indices = @transform_5, window_bounds = array<i64: 32, 1>}, {pipeline_mode = #tpu.pipeline_mode<synchronous>, transform_indices = @transform_6, window_bounds = array<i64: 1, 1>}, {transform_indices = @transform_7, window_bounds = array<i64: 1, 128>}]} {
    %c0 = arith.constant 0 : index
    %c0_0 = arith.constant 0 : index
    %0 = vector.load %arg1[%c0, %c0_0] : memref<2x128xf32, #tpu.memory_space<vmem>>, vector<2x128xf32>
    %c0_1 = arith.constant 0 : index
    %c0_2 = arith.constant 0 : index
    %1 = vector.load %arg2[%c0_1, %c0_2] : memref<32x2xf32, #tpu.memory_space<vmem>>, vector<32x2xf32>
    %c0_3 = arith.constant 0 : index
    %c0_4 = arith.constant 0 : index
    %2 = vector.load %arg3[%c0_3, %c0_4] : memref<32x1xf32, #tpu.memory_space<vmem>>, vector<32x1xf32>
    %3 = vector.extract_strided_slice %1 {offsets = [0, 0], sizes = [32, 1], strides = [1, 1]} : vector<32x2xf32> to vector<32x1xf32>
    %4 = vector.extract_strided_slice %0 {offsets = [0, 0], sizes = [1, 128], strides = [1, 1]} : vector<2x128xf32> to vector<1x128xf32>
    %5 = vector.broadcast %3 : vector<32x1xf32> to vector<32x128xf32>
    %6 = vector.broadcast %4 : vector<1x128xf32> to vector<32x128xf32>
    %7 = arith.mulf %5, %6 : vector<32x128xf32>
    %8 = vector.broadcast %2 : vector<32x1xf32> to vector<32x128xf32>
    %9 = arith.addf %8, %7 : vector<32x128xf32>
    %10 = vector.extract_strided_slice %1 {offsets = [0, 1], sizes = [32, 1], strides = [1, 1]} : vector<32x2xf32> to vector<32x1xf32>
    %11 = vector.extract_strided_slice %0 {offsets = [1, 0], sizes = [1, 128], strides = [1, 1]} : vector<2x128xf32> to vector<1x128xf32>
    %12 = vector.broadcast %10 : vector<32x1xf32> to vector<32x128xf32>
    %13 = vector.broadcast %11 : vector<1x128xf32> to vector<32x128xf32>
    %14 = arith.mulf %12, %13 : vector<32x128xf32>
    %15 = arith.addf %9, %14 : vector<32x128xf32>
    %cst = arith.constant 0.000000e+00 : f32
    %16 = vector.broadcast %cst : f32 to vector<32x128xf32>
    %17 = arith.maximumf %15, %16 : vector<32x128xf32>
    %c0_5 = arith.constant 0 : index
    %c0_6 = arith.constant 0 : index
    %18 = vector.load %arg4[%c0_5, %c0_6] : memref<32x32xf32, #tpu.memory_space<vmem>>, vector<32x32xf32>
    %c0_7 = arith.constant 0 : index
    %c0_8 = arith.constant 0 : index
    %19 = vector.load %arg5[%c0_7, %c0_8] : memref<32x1xf32, #tpu.memory_space<vmem>>, vector<32x1xf32>
    %cst_9 = arith.constant dense<0.000000e+00> : vector<32x128xf32>
    %20 = tpu.matmul %18, %17, %cst_9 {dimension_numbers = #tpu.dot_dimension_numbers<[1], [0], [0], [1], [0, 0, 1, 1], [], []>} : vector<32x32xf32>, vector<32x128xf32>, vector<32x128xf32> -> vector<32x128xf32>
    %21 = vector.broadcast %19 : vector<32x1xf32> to vector<32x128xf32>
    %22 = arith.addf %20, %21 : vector<32x128xf32>
    %cst_10 = arith.constant 0.000000e+00 : f32
    %23 = vector.broadcast %cst_10 : f32 to vector<32x128xf32>
    %24 = arith.maximumf %22, %23 : vector<32x128xf32>
    %c0_11 = arith.constant 0 : index
    %c0_12 = arith.constant 0 : index
    %25 = vector.load %arg6[%c0_11, %c0_12] : memref<32x1xf32, #tpu.memory_space<vmem>>, vector<32x1xf32>
    %c0_13 = arith.constant 0 : index
    %c0_14 = arith.constant 0 : index
    %26 = vector.load %arg7[%c0_13, %c0_14] : memref<1x1xf32, #tpu.memory_space<vmem>>, vector<1x1xf32>
    %27 = vector.broadcast %25 : vector<32x1xf32> to vector<32x128xf32>
    %28 = arith.mulf %27, %24 : vector<32x128xf32>
    %cst_15 = arith.constant dense<0.000000e+00> : vector<128xf32>
    %29 = vector.multi_reduction <add>, %28, %cst_15 [0] : vector<32x128xf32> to vector<128xf32>
    %30 = vector.shape_cast %29 : vector<128xf32> to vector<1x128xf32>
    %31 = vector.broadcast %26 : vector<1x1xf32> to vector<1x128xf32>
    %32 = arith.addf %30, %31 : vector<1x128xf32>
    %c0_16 = arith.constant 0 : index
    %c0_17 = arith.constant 0 : index
    %33 = vector.load %arg8[%c0_16, %c0_17] : memref<1x128xf32, #tpu.memory_space<vmem>>, vector<1x128xf32>
    tpu.vector_store %arg8[%c0_16, %c0_17], %32 {strides = array<i32>} : memref<1x128xf32, #tpu.memory_space<vmem>>, vector<1x128xf32>,
    return
  }
  func.func @transform_0(%arg0: i32) -> (i32, i32) {
    %c0_i32 = arith.constant 0 : i32
    %c0_i32_0 = arith.constant 0 : i32
    return %c0_i32, %arg0 : i32, i32
  }
  func.func @transform_1(%arg0: i32) -> (i32, i32) {
    %c0_i32 = arith.constant 0 : i32
    %c0_i32_0 = arith.constant 0 : i32
    %c0_i32_1 = arith.constant 0 : i32
    return %c0_i32, %c0_i32_0 : i32, i32
  }
  func.func @transform_2(%arg0: i32) -> (i32, i32) {
    %c0_i32 = arith.constant 0 : i32
    %c0_i32_0 = arith.constant 0 : i32
    %c0_i32_1 = arith.constant 0 : i32
    return %c0_i32, %c0_i32_0 : i32, i32
  }
  func.func @transform_3(%arg0: i32) -> (i32, i32) {
    %c0_i32 = arith.constant 0 : i32
    %c0_i32_0 = arith.constant 0 : i32
    %c0_i32_1 = arith.constant 0 : i32
    return %c0_i32, %c0_i32_0 : i32, i32
  }
  func.func @transform_4(%arg0: i32) -> (i32, i32) {
    %c0_i32 = arith.constant 0 : i32
    %c0_i32_0 = arith.constant 0 : i32
    %c0_i32_1 = arith.constant 0 : i32
    return %c0_i32, %c0_i32_0 : i32, i32
  }
  func.func @transform_5(%arg0: i32) -> (i32, i32) {
    %c0_i32 = arith.constant 0 : i32
    %c0_i32_0 = arith.constant 0 : i32
    %c0_i32_1 = arith.constant 0 : i32
    return %c0_i32, %c0_i32_0 : i32, i32
  }
  func.func @transform_6(%arg0: i32) -> (i32, i32) {
    %c0_i32 = arith.constant 0 : i32
    %c0_i32_0 = arith.constant 0 : i32
    %c0_i32_1 = arith.constant 0 : i32
    return %c0_i32, %c0_i32_0 : i32, i32
  }
  func.func @transform_7(%arg0: i32) -> (i32, i32) {
    %c0_i32 = arith.constant 0 : i32
    %c0_i32_0 = arith.constant 0 : i32
    return %c0_i32, %arg0 : i32, i32
  }
}

</mosaic_0001>

<llo_original>
// kernel: tpu_custom_call.1
$region0: #{tpu_custom_call.1}
  #allocation0 [shape = 'u32[]', space=smem, size = 0x4, offset = 0x4, fixed_abs, tag = 'smem constant byte address 0x4 - core index']
  #allocation1 [shape = 'u32[144,128]{1,0:T(1,128)}', space=vmem, size = 0x12000, scoped, tag = 'internal scratch']
  #allocation2 [shape = 'f32[1,1]{1,0:T(1,128)S(1)}', space=vmem, size = 0x200, scoped, tag = 'scoped memory for tpu_custom_call.1']
  %s0 = inlined_call_operand.vmem [shape: f32[2,8], index: 0, kind: input, shape index: {}]
  %s1 = inlined_call_operand.vmem [shape: f32[32,2], index: 1, kind: input, shape index: {}]
  %s2 = inlined_call_operand.vmem [shape: f32[32,1], index: 2, kind: input, shape index: {}]
  %s3 = inlined_call_operand.vmem [shape: f32[32,32], index: 3, kind: input, shape index: {}]
  %s4 = inlined_call_operand.vmem [shape: f32[32,1], index: 4, kind: input, shape index: {}]
  %s5 = inlined_call_operand.vmem [shape: f32[32,1], index: 5, kind: input, shape index: {}]
  %s6 = inlined_call_operand.<no memory space> [shape: f32[1,1], index: 6, kind: input, shape index: {}]
  %s7 = inlined_call_operand.hbm [shape: f32[1,8], index: 7, kind: output, shape index: {}]
  %s8 = sld [smem:[#allocation0]]
  $region38: #{tpu_custom_call.1} parent=0
    _
  %s10 = ssub.s32 1, %s8
  %s11 = scalar_select 0, %s10, %s8
  %v12 = vstv %s6
  %13 = vst [vmem:[#allocation2] sm:$0x1] %v12
  $region1: #{tpu_custom_call.1} parent=0
    #allocation3 [shape = 'u8[512]{0}', space=vmem, size = 0x400, scoped, tag = 'output window, operand 0, single buffered']
    #allocation4 [shape = 's32[1]{0}', space=sflag, size = 0x4, scoped, tag = 'scoped memory for tpu_custom_call.1']
    %14 = vsyncpa [#allocation4], 0
    // Predicated region
    $region2: #{tpu_custom_call.1} parent=1 // pred_check
      _
    $region3: #{tpu_custom_call.1} parent=1 // pred_check_branch
      %16 = sbr.rel (0) target = $region5
    $region4: #{tpu_custom_call.1} parent=1 // pred_region
      _
    $region5: #{tpu_custom_call.1} parent=1 // pred_fallthru
      _
    // Predicated region
    $region6: #{tpu_custom_call.1} parent=1 // pred_check
      _
    $region7: #{tpu_custom_call.1} parent=1 // pred_check_branch
      %18 = sbr.rel (0) target = $region9
    $region8: #{tpu_custom_call.1} parent=1 // pred_region
      _
    $region9: #{tpu_custom_call.1} parent=1 // pred_fallthru
      _
    // Predicated region
    $region10: #{tpu_custom_call.1} parent=1 // pred_check
      _
    $region11: #{tpu_custom_call.1} parent=1 // pred_check_branch
      %20 = sbr.rel (0) target = $region13
    $region12: #{tpu_custom_call.1} parent=1 // pred_region
      _
    $region13: #{tpu_custom_call.1} parent=1 // pred_fallthru
      _
    // Predicated region
    $region14: #{tpu_custom_call.1} parent=1 // pred_check
      _
    $region15: #{tpu_custom_call.1} parent=1 // pred_check_branch
      %22 = sbr.rel (0) target = $region17
    $region16: #{tpu_custom_call.1} parent=1 // pred_region
      _
    $region17: #{tpu_custom_call.1} parent=1 // pred_fallthru
      _
    // Predicated region
    $region18: #{tpu_custom_call.1} parent=1 // pred_check
      _
    $region19: #{tpu_custom_call.1} parent=1 // pred_check_branch
      %24 = sbr.rel (0) target = $region21
    $region20: #{tpu_custom_call.1} parent=1 // pred_region
      _
    $region21: #{tpu_custom_call.1} parent=1 // pred_fallthru
      _
    // Predicated region
    $region22: #{tpu_custom_call.1} parent=1 // pred_check
      _
    $region23: #{tpu_custom_call.1} parent=1 // pred_check_branch
      %26 = sbr.rel (0) target = $region25
    $region24: #{tpu_custom_call.1} parent=1 // pred_region
      _
    $region25: #{tpu_custom_call.1} parent=1 // pred_fallthru
      _
    // Predicated region
    $region26: #{tpu_custom_call.1} parent=1 // pred_check
      _
    $region27: #{tpu_custom_call.1} parent=1 // pred_check_branch
      %28 = sbr.rel (0) target = $region29
    $region28: #{tpu_custom_call.1} parent=1 // pred_region
      _
    $region29: #{tpu_custom_call.1} parent=1 // pred_fallthru
      _
    %v29 = vld [vmem:[%s0] sm:$0x3]
    %v30 = vld [vmem:[%s1] sm:$0xff]
    %v31 = vld [vmem:[%s1 + $0x8] sm:$0xff]
    %v32 = vld [vmem:[%s1 + $0x10] sm:$0xff]
    %v33 = vld [vmem:[%s1 + $0x18] sm:$0xff]
    %v34 = vld [vmem:[%s2] sm:$0xff]
    %v35 = vld [vmem:[%s2 + $0x8] sm:$0xff]
    %v36 = vld [vmem:[%s2 + $0x10] sm:$0xff]
    %v37 = vld [vmem:[%s2 + $0x18] sm:$0xff]
    %39 = vset.pattern.permute.xlu0 0
    %40 = vperm.xlu0 %39, %v30
    %v41 = vpop.permute.xlu0 %40
    %44 = vset.pattern.permute.xlu0 0
    %45 = vperm.xlu0 %44, %v31
    %v46 = vpop.permute.xlu0 %45
    %49 = vset.pattern.permute.xlu0 0
    %50 = vperm.xlu0 %49, %v32
    %v51 = vpop.permute.xlu0 %50
    %54 = vset.pattern.permute.xlu0 0
    %55 = vperm.xlu0 %54, %v33
    %v56 = vpop.permute.xlu0 %55
    %v58 = vlaneseq
    %v59 = vshrl.u32 %v58, 7
    %v60 = vsub.s32 0, %v59
    %v61 = vrot.slane %v29, %v60
    %v62 = vmul.f32 %v41, %v61
    %v63 = vmul.f32 %v46, %v61
    %v64 = vmul.f32 %v51, %v61
    %v65 = vmul.f32 %v56, %v61
    %67 = vset.pattern.permute.xlu0 0
    %68 = vperm.xlu0 %67, %v34
    %v69 = vpop.permute.xlu0 %68
    %72 = vset.pattern.permute.xlu0 0
    %73 = vperm.xlu0 %72, %v35
    %v74 = vpop.permute.xlu0 %73
    %77 = vset.pattern.permute.xlu0 0
    %78 = vperm.xlu0 %77, %v36
    %v79 = vpop.permute.xlu0 %78
    %82 = vset.pattern.permute.xlu0 0
    %83 = vperm.xlu0 %82, %v37
    %v84 = vpop.permute.xlu0 %83
    %v86 = vadd.f32 %v69, %v62
    %v87 = vadd.f32 %v74, %v63
    %v88 = vadd.f32 %v79, %v64
    %v89 = vadd.f32 %v84, %v65
    %90 = vset.pattern.permute.xlu0 1
    %91 = vperm.xlu0 %90, %v30
    %v92 = vpop.permute.xlu0 %91
    %94 = vset.pattern.permute.xlu0 1
    %95 = vperm.xlu0 %94, %v31
    %v96 = vpop.permute.xlu0 %95
    %98 = vset.pattern.permute.xlu0 1
    %99 = vperm.xlu0 %98, %v32
    %v100 = vpop.permute.xlu0 %99
    %102 = vset.pattern.permute.xlu0 1
    %103 = vperm.xlu0 %102, %v33
    %v104 = vpop.permute.xlu0 %103
    %v106 = vlaneseq
    %v107 = vshrl.u32 %v106, 7
    %v108 = vsub.s32 1, %v107
    %v109 = vrot.slane %v29, %v108
    %v110 = vmul.f32 %v92, %v109
    %v111 = vmul.f32 %v96, %v109
    %v112 = vmul.f32 %v100, %v109
    %v113 = vmul.f32 %v104, %v109
    %v114 = vadd.f32 %v86, %v110
    %v115 = vadd.f32 %v87, %v111
    %v116 = vadd.f32 %v88, %v112
    %v117 = vadd.f32 %v89, %v113
    %v118 = vmax.f32 %v114, 0.0
    %v119 = vmax.f32 %v115, 0.0
    %v120 = vmax.f32 %v116, 0.0
    %v121 = vmax.f32 %v117, 0.0
    %v122 = vld [vmem:[%s3] sm:$0xff]
    %v123 = vld [vmem:[%s3 + $0x8] sm:$0xff]
    %v124 = vld [vmem:[%s3 + $0x10] sm:$0xff]
    %v125 = vld [vmem:[%s3 + $0x18] sm:$0xff]
    %v126 = vld [vmem:[%s4] sm:$0xff]
    %v127 = vld [vmem:[%s4 + $0x8] sm:$0xff]
    %v128 = vld [vmem:[%s4 + $0x10] sm:$0xff]
    %v129 = vld [vmem:[%s4 + $0x18] sm:$0xff]
    %131 = vset.pattern.permute.xlu0 0
    %132 = vperm.xlu0 %131, %v126
    %v133 = vpop.permute.xlu0 %132
    %136 = vset.pattern.permute.xlu0 0
    %137 = vperm.xlu0 %136, %v127
    %v138 = vpop.permute.xlu0 %137
    %141 = vset.pattern.permute.xlu0 0
    %142 = vperm.xlu0 %141, %v128
    %v143 = vpop.permute.xlu0 %142
    %146 = vset.pattern.permute.xlu0 0
    %147 = vperm.xlu0 %146, %v129
    %v148 = vpop.permute.xlu0 %147
    %vm150 = vcmask 261120
    %v152 = vsel %vm150, %v122, 0
    %v155 = vsel %vm150, %v123, 0
    %v158 = vsel %vm150, %v124, 0
    %v161 = vsel %vm150, %v125, 0
    %163 = vmatprep.subr.mxu0 0.0
    %164 = vmatpush1.msra.mxu0 %v118
    %165 = vmatprep.subr.mxu0 0.0
    %166 = vmatpush1.msra.mxu0 %v119
    %167 = vmatprep.subr.mxu0 0.0
    %168 = vmatpush1.msra.mxu0 %v120
    %169 = vmatprep.subr.mxu0 0.0
    %170 = vmatpush1.msra.mxu0 %v121
    %171 = vmatprep.subr.mxu0 0.0
    %172 = vmatpush1.msra.mxu0 0.0
    %173 = vmatprep.subr.mxu0 0.0
    %174 = vmatpush1.msra.mxu0 0.0
    %175 = vmatprep.subr.mxu0 0.0
    %176 = vmatpush1.msra.mxu0 0.0
    %177 = vmatprep.subr.mxu0 0.0
    %178 = vmatpush1.msra.mxu0 0.0
    %179 = vmatprep.subr.mxu0 0.0
    %180 = vmatpush1.msra.mxu0 0.0
    %181 = vmatprep.subr.mxu0 0.0
    %182 = vmatpush1.msra.mxu0 0.0
    %183 = vmatprep.subr.mxu0 0.0
    %184 = vmatpush1.msra.mxu0 0.0
    %185 = vmatprep.subr.mxu0 0.0
    %186 = vmatpush1.msra.mxu0 0.0
    %187 = vmatprep.subr.mxu0 0.0
    %188 = vmatpush1.msra.mxu0 0.0
    %189 = vmatprep.subr.mxu0 0.0
    %190 = vmatpush1.msra.mxu0 0.0
    %191 = vmatprep.subr.mxu0 0.0
    %192 = vmatpush1.msra.mxu0 0.0
    %193 = vmatprep.subr.mxu0 0.0
    %194 = vmatpush1.msra.mxu0 0.0
    %195 = vmatprep.subr.mxu0 0.0
    %196 = vmatpush1.msra.mxu0 0.0
    %197 = vmatprep.subr.mxu0 0.0
    %198 = vmatpush1.msra.mxu0 0.0
    %199 = vmatprep.subr.mxu0 0.0
    %200 = vmatpush1.msra.mxu0 0.0
    %201 = vmatprep.subr.mxu0 0.0
    %202 = vmatpush1.msra.mxu0 0.0
    %203 = vmatprep.subr.mxu0 0.0
    %204 = vmatpush1.msra.mxu0 0.0
    %205 = vmatprep.subr.mxu0 0.0
    %206 = vmatpush1.msra.mxu0 0.0
    %207 = vmatprep.subr.mxu0 0.0
    %208 = vmatpush1.msra.mxu0 0.0
    %209 = vmatprep.subr.mxu0 0.0
    %210 = vmatpush1.msra.mxu0 0.0
    %211 = vmatprep.subr.mxu0 0.0
    %212 = vmatpush1.msra.mxu0 0.0
    %213 = vmatprep.subr.mxu0 0.0
    %214 = vmatpush1.msra.mxu0 0.0
    %215 = vmatprep.subr.mxu0 0.0
    %216 = vmatpush1.msra.mxu0 0.0
    %217 = vmatprep.subr.mxu0 0.0
    %218 = vmatpush1.msra.mxu0 0.0
    %219 = vmatprep.subr.mxu0 0.0
    %220 = vmatpush1.msra.mxu0 0.0
    %221 = vmatprep.subr.mxu0 0.0
    %222 = vmatpush1.msra.mxu0 0.0
    %223 = vmatprep.subr.mxu0 0.0
    %224 = vmatpush1.msra.mxu0 0.0
    %225 = vmatprep.subr.mxu0 0.0
    %226 = vmatpush1.msra.mxu0 0.0
    %227 = vmatprep.mubr.f32.mxu0 0.0
    %228 = vmatmul.mubr.f32.gmra.mrb[0].mxu0 %v152
    %v229 = vpop.f32.mrb[0].mxu0
    %v230 = vadd.f32 %v133, %v229
    %v231 = vpop.f32.mrb[0].mxu0
    %232 = vmatprep.mubr.f32.mxu0 0.0
    %233 = vmatmul.mubr.f32.gmra.mrb[0].mxu0 %v155
    %v234 = vpop.f32.mrb[0].mxu0
    %v235 = vadd.f32 %v138, %v234
    %v236 = vpop.f32.mrb[0].mxu0
    %237 = vmatprep.mubr.f32.mxu0 0.0
    %238 = vmatmul.mubr.f32.gmra.mrb[0].mxu0 %v158
    %v239 = vpop.f32.mrb[0].mxu0
    %v240 = vadd.f32 %v143, %v239
    %v241 = vpop.f32.mrb[0].mxu0
    %242 = vmatprep.mubr.f32.mxu0 0.0
    %243 = vmatmul.mubr.f32.gmra.mrb[0].mxu0 %v161
    %v244 = vpop.f32.mrb[0].mxu0
    %v245 = vadd.f32 %v148, %v244
    %v246 = vpop.f32.mrb[0].mxu0
    %247 = vdwg.mxu0
    %v248 = vmax.f32 %v230, 0.0
    %v249 = vmax.f32 %v235, 0.0
    %v250 = vmax.f32 %v240, 0.0
    %v251 = vmax.f32 %v245, 0.0
    %v252 = vld [vmem:[%s5] sm:$0xff]
    %v253 = vld [vmem:[%s5 + $0x8] sm:$0xff]
    %v254 = vld [vmem:[%s5 + $0x10] sm:$0xff]
    %v255 = vld [vmem:[%s5 + $0x18] sm:$0xff]
    %v256 = vld [vmem:[#allocation2] sm:$0x1]
    %258 = vset.pattern.permute.xlu0 0
    %259 = vperm.xlu0 %258, %v252
    %v260 = vpop.permute.xlu0 %259
    %263 = vset.pattern.permute.xlu0 0
    %264 = vperm.xlu0 %263, %v253
    %v265 = vpop.permute.xlu0 %264
    %268 = vset.pattern.permute.xlu0 0
    %269 = vperm.xlu0 %268, %v254
    %v270 = vpop.permute.xlu0 %269
    %273 = vset.pattern.permute.xlu0 0
    %274 = vperm.xlu0 %273, %v255
    %v275 = vpop.permute.xlu0 %274
    %v277 = vmul.f32 %v260, %v248
    %v278 = vmul.f32 %v265, %v249
    %v279 = vmul.f32 %v270, %v250
    %v280 = vmul.f32 %v275, %v251
    %v281 = vadd.f32 %v277, %v278
    %v282 = vadd.f32 %v281, %v279
    %v283 = vadd.f32 %v282, %v280
    %v284 = vrot.slane %v283, 4
    %v285 = vadd.f32 %v283, %v284
    %v286 = vrot.slane %v285, 2
    %v287 = vadd.f32 %v285, %v286
    %v288 = vrot.slane %v287, 1
    %v289 = vadd.f32 %v287, %v288
    %291 = vset.pattern.permute.xlu0 0
    %292 = vperm.xlu0 %291, %v256
    %v293 = vpop.permute.xlu0 %292
    %v295 = vlaneseq
    %v296 = vshrl.u32 %v295, 7
    %v297 = vsub.s32 0, %v296
    %v298 = vrot.slane %v293, %v297
    %v299 = vadd.f32 %v289, %v298
    %300 = vst [vmem:[#allocation3] sm:$0x1] %v299
    // Predicated region
    $region30: #{tpu_custom_call.1} parent=1 // pred_check
      _
    $region31: #{tpu_custom_call.1} parent=1 // pred_check_branch
      %302 = sbr.rel (0) target = $region33
    $region32: #{tpu_custom_call.1} parent=1 // pred_region
      %s304 = ssub.s32 16, 16
      %305 = vsyncadd [#allocation4], %s304
      %s307 = sshll.u32 [#allocation3], 4
      %s308 = int_to_ptr.vmem [resolvable:$true] %s307
      %310 = dma.vmem_to_hbm [thread:$0]  %s308, 16, %s7, [#allocation4]
    $region33: #{tpu_custom_call.1} parent=1 // pred_fallthru
      _
    // Predicated region
    $region34: #{tpu_custom_call.1} parent=1 // pred_check
      _
    $region35: #{tpu_custom_call.1} parent=1 // pred_check_branch
      %312 = sbr.rel (0) target = $region37
    $region36: #{tpu_custom_call.1} parent=1 // pred_region
      %313 = dma.done [#allocation4], 16
    $region37: #{tpu_custom_call.1} parent=1 // pred_fallthru
      _
    %314 = vsyncpa [#allocation4], 1

</llo_original>
